<compile_context>
chip_gen: v7x
topology: tpu7x:2x2x1
jax: 0.10.0
libtpu: 0.0.40
codegen_flags: <defaults>
</compile_context>

<pallas_src>
import jax
import jax.numpy as jnp
from jax.experimental import pallas as pl
from jax.experimental.pallas import tpu as pltpu

_MIB = 1024 * 1024


# ----------------------------------------------------------------------------------
# Kernels
# ----------------------------------------------------------------------------------
def swiglu_kernel_resident(x_ref, w13_ref, b13_ref, w2_ref, b2_ref, o_ref):
    """Single hidden tile; weights are VMEM-resident across row tiles."""
    tk = w2_ref.shape[0]                                    # hidden size (static)
    x = x_ref[...].astype(w13_ref.dtype)                    # LHS cast -> native MXU path
    h = jnp.dot(x, w13_ref[...], preferred_element_type=jnp.float32)
    h = h + b13_ref[...]                                     # [tm, 2*tk] f32
    h1 = h[:, :tk]
    h3 = h[:, tk:]
    gated = jax.nn.silu(h1) * h3                             # VPU/EUP, f32
    out = jnp.dot(gated.astype(w2_ref.dtype), w2_ref[...],
                  preferred_element_type=jnp.float32)
    # TODO(synk): dropout (training mode) not implemented; eval-mode identity.
    o_ref[...] = (out + b2_ref[...]).astype(o_ref.dtype)


def swiglu_kernel_tiled(x_ref, w13_ref, b13_ref, w2_ref, b2_ref, o_ref, acc_ref):
    """Hidden axis tiled (grid axis 1, reduction) with an f32 VMEM accumulator."""
    k = pl.program_id(1)
    tk = w2_ref.shape[0]                                     # hidden tile size (static)

    x = x_ref[...].astype(w13_ref.dtype)                     # LHS cast -> native MXU path
    h = jnp.dot(x, w13_ref[...], preferred_element_type=jnp.float32)
    h = h + b13_ref[...]                                     # per-hidden-tile bias
    h1 = h[:, :tk]
    h3 = h[:, tk:]
    gated = jax.nn.silu(h1) * h3

    partial = jnp.dot(gated.astype(w2_ref.dtype), w2_ref[...],
                      preferred_element_type=jnp.float32)

    @pl.when(k == 0)
    def _first():
        # Write the first partial directly: no zero-init store + re-read.
        acc_ref[...] = partial

    @pl.when(k > 0)
    def _accumulate():
        acc_ref[...] += partial

    @pl.when(k == pl.num_programs(1) - 1)
    def _finalize():
        # Bias add + downcast only once per output tile.
        # TODO(synk): dropout (training mode) not implemented; eval-mode identity.
        o_ref[...] = (acc_ref[...] + b2_ref[...]).astype(o_ref.dtype)


# ----------------------------------------------------------------------------------
# Tile / VMEM planning helpers
# ----------------------------------------------------------------------------------
def _vmem_budget_bytes():
    """Per-generation usable VMEM budget (conservative if the query fails)."""
    try:
        cap = int(pltpu.get_tpu_info().vmem_capacity_bytes)
    except Exception:
        cap = 64 * _MIB            # assume v7x-like (smallest) if unknown
    if cap >= 100 * _MIB:          # v5e / v6e: 128 MiB physical
        return 100 * _MIB
    return 48 * _MIB               # v7x: 64 MiB physical


def _pick_hidden_tile(hidden, requested):
    """Largest divisor of `hidden` that is a multiple of 128 and <= requested."""
    if requested is None or requested >= hidden:
        return hidden
    if hidden % 128 != 0:
        return hidden              # full-extent block is always layout-legal
    cap = min(max(128, requested), hidden)
    best, t = 128, 128
    while t <= cap:
        if hidden % t == 0:
            best = t
        t += 128
    return best


def _auto_hidden_tile(dim, hidden, w_bytes, budget):
    """Resident weights when they fit comfortably; otherwise tile the hidden axis."""
    resident_bytes = 3 * dim * hidden * w_bytes     # w13 (2*dim*hidden) + w2 (hidden*dim)
    if resident_bytes <= 0.4 * budget:
        return hidden
    return _pick_hidden_tile(hidden, 512)


def _pick_row_tile(n, requested, budget):
    # v6e (128 MiB) wants large row tiles to beat the HBM weight-streaming roofline;
    # v7x (64 MiB, 3.2 TB/s) needs much less and has half the VMEM.
    default = 1024 if budget >= 100 * _MIB else 512
    tm = requested if requested is not None else default
    n8 = max(8, ((n + 7) // 8) * 8)
    if n8 <= tm:
        # Small-N / decode: split into (at least) two row tiles so both v7x
        # TensorCores get work, without over-padding tiny batches.
        tm = ((n8 // 2 + 7) // 8) * 8 if n8 >= 16 else n8
    return max(8, tm)


def _vmem_demand_bytes(tm, dim, tk, x_bytes, w_bytes, o_bytes, use_acc):
    d = 2 * tm * dim * x_bytes              # x tile (double-buffered)
    d += 2 * dim * (2 * tk) * w_bytes       # fused w13 tile (double-buffered)
    d += 2 * (2 * tk) * 4                   # fused bias tile (f32)
    d += 2 * tk * dim * w_bytes             # w2 tile (double-buffered)
    d += 2 * dim * 4                        # b2
    d += 2 * tm * dim * o_bytes             # output tile (double-buffered)
    d += tm * (2 * tk) * 4                  # [tm, 2*tk] f32 intermediate
    if use_acc:
        d += tm * dim * 4                   # f32 accumulator scratch
    return d


# ----------------------------------------------------------------------------------
# Public API
# ----------------------------------------------------------------------------------
def fuse_swiglu_weights(w1, b1, w3, b3, w2, b2, *, hidden_tile=None, param_dtype=None):
    """One-time weight prep (hoisted out of the per-call path).

    w1/w3: [dim, hidden], w2: [hidden, dim], biases [1, F] (weights stored [in, out],
    i.e. transposed vs. torch nn.Linear.weight). Returns a params dict holding the
    block-interleaved fused [dim, 2*hidden] gate weight plus the chosen hidden tile.
    """
    dim, hidden = w1.shape
    if param_dtype is not None:
        w1 = w1.astype(param_dtype)
        w3 = w3.astype(param_dtype)
        w2 = w2.astype(param_dtype)
    w_bytes = jnp.dtype(w1.dtype).itemsize
    budget = _vmem_budget_bytes()

    if hidden_tile is None:
        tk = _auto_hidden_tile(dim, hidden, w_bytes, budget)
    else:
        tk = _pick_hidden_tile(hidden, hidden_tile)
    nk = hidden // tk

    # Block-interleave so hidden tile k occupies contiguous columns
    # [k*2*tk, (k+1)*2*tk): first tk columns = w1 tile k, next tk = w3 tile k.
    w13 = jnp.concatenate(
        [w1.reshape(dim, nk, tk), w3.reshape(dim, nk, tk)], axis=-1
    ).reshape(dim, 2 * hidden)
    b13 = jnp.concatenate(
        [b1.reshape(1, nk, tk).astype(jnp.float32),
         b3.reshape(1, nk, tk).astype(jnp.float32)], axis=-1
    ).reshape(1, 2 * hidden)

    return dict(w13=w13, b13=b13, w2=w2, b2=b2.reshape(1, dim).astype(jnp.float32),
                tk=tk, dim=dim, hidden=hidden)


def swiglu(x, params, *, row_tile=None):
    """y = w2(silu(w1(x)) * w3(x)) + b2 for x: [..., dim] (dropout = eval identity)."""
    dim, hidden, tk = params["dim"], params["hidden"], params["tk"]
    w13, b13, w2, b2 = params["w13"], params["b13"], params["w2"], params["b2"]
    nk = hidden // tk

    out_shape = x.shape
    out_dtype = x.dtype
    x2d = x.reshape(-1, dim)
    n = x2d.shape[0]

    budget = _vmem_budget_bytes()
    x_bytes = jnp.dtype(x2d.dtype).itemsize
    w_bytes = jnp.dtype(w13.dtype).itemsize
    o_bytes = jnp.dtype(out_dtype).itemsize
    use_acc = nk > 1

    tm = _pick_row_tile(n, row_tile, budget)
    # Shrink the row tile if the buffer plan would not fit the per-generation budget.
    while tm > 8 and _vmem_demand_bytes(tm, dim, tk, x_bytes, w_bytes, o_bytes, use_acc) > budget:
        tm = max(8, ((tm // 2) + 7) // 8 * 8)

    n_pad = pl.cdiv(max(n, 1), tm) * tm
    if n_pad != n:
        x2d = jnp.pad(x2d, ((0, n_pad - n), (0, 0)))
    nm = n_pad // tm

    demand = _vmem_demand_bytes(tm, dim, tk, x_bytes, w_bytes, o_bytes, use_acc)
    vmem_limit = int(min(budget, max(demand * 5 // 4 + 2 * _MIB, 32 * _MIB)))

    weight_bytes_streamed = 3 * dim * hidden * w_bytes * (nm if nk > 1 else 1)
    cost = pl.CostEstimate(
        flops=int(6 * n_pad * dim * hidden),
        transcendentals=int(n_pad * hidden),
        bytes_accessed=int(n_pad * dim * (x_bytes + o_bytes) + weight_bytes_streamed),
    )

    if nk == 1:
        # Resident-weight path: constant block indices -> weights DMA'd once and
        # reused across all row tiles; no accumulator scratch needed.
        out2d = pl.pallas_call(
            swiglu_kernel_resident,
            out_shape=jax.ShapeDtypeStruct((n_pad, dim), out_dtype),
            grid_spec=pltpu.PrefetchScalarGridSpec(
                num_scalar_prefetch=0,
                grid=(nm,),
                in_specs=[
                    pl.BlockSpec((tm, dim), lambda i: (i, 0)),        # x tile
                    pl.BlockSpec((dim, 2 * tk), lambda i: (0, 0)),    # fused w1|w3 (resident)
                    pl.BlockSpec((1, 2 * tk), lambda i: (0, 0)),      # fused b1|b3 (resident)
                    pl.BlockSpec((tk, dim), lambda i: (0, 0)),        # w2 (resident)
                    pl.BlockSpec((1, dim), lambda i: (0, 0)),         # b2 (resident)
                ],
                out_specs=pl.BlockSpec((tm, dim), lambda i: (i, 0)),
            ),
            compiler_params=pltpu.CompilerParams(
                dimension_semantics=("parallel",),
                vmem_limit_bytes=vmem_limit,
            ),
            cost_estimate=cost,
        )(x2d, w13, b13, w2, b2)
    else:
        # Hidden-tiled reduction path.
        out2d = pl.pallas_call(
            swiglu_kernel_tiled,
            out_shape=jax.ShapeDtypeStruct((n_pad, dim), out_dtype),
            grid_spec=pltpu.PrefetchScalarGridSpec(
                num_scalar_prefetch=0,
                grid=(nm, nk),                                        # reduction axis last
                in_specs=[
                    pl.BlockSpec((tm, dim), lambda i, k: (i, 0)),     # x tile
                    pl.BlockSpec((dim, 2 * tk), lambda i, k: (0, k)), # fused w1|w3 tile
                    pl.BlockSpec((1, 2 * tk), lambda i, k: (0, k)),   # fused b1|b3 tile
                    pl.BlockSpec((tk, dim), lambda i, k: (k, 0)),     # w2 tile
                    pl.BlockSpec((1, dim), lambda i, k: (0, 0)),      # b2 (constant)
                ],
                out_specs=pl.BlockSpec((tm, dim), lambda i, k: (i, 0)),
                scratch_shapes=[pltpu.VMEM((tm, dim), jnp.float32)],  # f32 accumulator
            ),
            compiler_params=pltpu.CompilerParams(
                dimension_semantics=("parallel", "arbitrary"),
                vmem_limit_bytes=vmem_limit,
            ),
            cost_estimate=cost,
        )(x2d, w13, b13, w2, b2)

    return out2d[:n].reshape(out_shape)


def swiglu_ref(x2d, w1, b1, w3, b3, w2, b2):
    h1 = x2d @ w1 + b1
    h3 = x2d @ w3 + b3
    return (jax.nn.silu(h1) * h3) @ w2 + b2


# ----------------------------------------------------------------------------------
# Demo / correctness check
# ----------------------------------------------------------------------------------
if __name__ == "__main__":
    # Small shapes consistent with the module (tokens = batch*seq, dim, hidden_dim),
    # lane-aligned (dim, hidden multiples of 128).
    batch, seq, dim, hidden = 2, 8, 128, 512
    key = jax.random.PRNGKey(0)
    kx, k1, kb1, k3, kb3, k2, kb2 = jax.random.split(key, 7)

    x = jax.random.normal(kx, (batch, seq, dim), dtype=jnp.float32)

    # Deterministic synthetic parameters, stored [in, out] (transposed vs. torch).
    scale = 0.1
    w1 = scale * jax.random.normal(k1, (dim, hidden), dtype=jnp.float32)
    b1 = scale * jax.random.normal(kb1, (1, hidden), dtype=jnp.float32)
    w3 = scale * jax.random.normal(k3, (dim, hidden), dtype=jnp.float32)
    b3 = scale * jax.random.normal(kb3, (1, hidden), dtype=jnp.float32)
    w2 = scale * jax.random.normal(k2, (hidden, dim), dtype=jnp.float32)
    b2 = scale * jax.random.normal(kb2, (1, dim), dtype=jnp.float32)

    ref = swiglu_ref(x.reshape(-1, dim), w1, b1, w3, b3, w2, b2).reshape(batch, seq, dim)

    # 1) Resident-weight path (auto hidden_tile == hidden; weights fit VMEM), f32.
    params_res = fuse_swiglu_weights(w1, b1, w3, b3, w2, b2)
    out_res = swiglu(x, params_res)
    jax.block_until_ready(out_res)
    assert out_res.shape == (batch, seq, dim)
    assert jnp.allclose(out_res, ref, atol=1e-4, rtol=1e-4), "resident path mismatch"

    # 2) Hidden-tiled reduction path (nk=2): exercises first-write/accumulate/finalize.
    params_tiled = fuse_swiglu_weights(w1, b1, w3, b3, w2, b2, hidden_tile=256)
    out_tiled = swiglu(x, params_tiled)
    jax.block_until_ready(out_tiled)
    assert jnp.allclose(out_tiled, ref, atol=1e-4, rtol=1e-4), "tiled path mismatch"

    # 3) bf16 weights + activations: native single-pass MXU path, f32 accumulation.
    params_bf16 = fuse_swiglu_weights(w1, b1, w3, b3, w2, b2, hidden_tile=256,
                                      param_dtype=jnp.bfloat16)
    out_bf16 = swiglu(x.astype(jnp.bfloat16), params_bf16)
    jax.block_until_ready(out_bf16)
    assert jnp.allclose(out_bf16.astype(jnp.float32), ref, atol=0.1, rtol=0.1), \
        "bf16 path mismatch"

    print("KERNEL_OK")
</pallas_src>

<mosaic_0001>
module attributes {stable_mosaic.version = 11 : i64} {
  func.func @swiglu_kernel_resident(%arg0: i32, %arg1: memref<8x128xf32, #tpu.memory_space<vmem>>, %arg2: memref<128x1024xf32, #tpu.memory_space<vmem>>, %arg3: memref<1x1024xf32, #tpu.memory_space<vmem>>, %arg4: memref<512x128xf32, #tpu.memory_space<vmem>>, %arg5: memref<1x128xf32, #tpu.memory_space<vmem>>, %arg6: memref<8x128xf32, #tpu.memory_space<vmem>>) attributes {dimension_semantics = [#tpu.dimension_semantics<parallel>], iteration_bounds = array<i64: 2>, scalar_prefetch = 0 : i64, scratch_operands = 0 : i64, tpu.core_type = #tpu.core_type<tc>, window_params = [{transform_indices = @transform_0, window_bounds = array<i64: 8, 128>}, {pipeline_mode = #tpu.pipeline_mode<synchronous>, transform_indices = @transform_1, window_bounds = array<i64: 128, 1024>}, {pipeline_mode = #tpu.pipeline_mode<synchronous>, transform_indices = @transform_2, window_bounds = array<i64: 1, 1024>}, {pipeline_mode = #tpu.pipeline_mode<synchronous>, transform_indices = @transform_3, window_bounds = array<i64: 512, 128>}, {pipeline_mode = #tpu.pipeline_mode<synchronous>, transform_indices = @transform_4, window_bounds = array<i64: 1, 128>}, {transform_indices = @transform_5, window_bounds = array<i64: 8, 128>}]} {
    %c0 = arith.constant 0 : index
    %c0_0 = arith.constant 0 : index
    %0 = vector.load %arg1[%c0, %c0_0] : memref<8x128xf32, #tpu.memory_space<vmem>>, vector<8x128xf32>
    %c0_1 = arith.constant 0 : index
    %c0_2 = arith.constant 0 : index
    %1 = vector.load %arg2[%c0_1, %c0_2] : memref<128x1024xf32, #tpu.memory_space<vmem>>, vector<128x1024xf32>
    %cst = arith.constant dense<0.000000e+00> : vector<8x1024xf32>
    %2 = tpu.matmul %0, %1, %cst {dimension_numbers = #tpu.dot_dimension_numbers<[1], [0], [0], [1], [0, 0, 1, 1], [], []>} : vector<8x128xf32>, vector<128x1024xf32>, vector<8x1024xf32> -> vector<8x1024xf32>
    %c0_3 = arith.constant 0 : index
    %c0_4 = arith.constant 0 : index
    %3 = vector.load %arg3[%c0_3, %c0_4] : memref<1x1024xf32, #tpu.memory_space<vmem>>, vector<1x1024xf32>
    %4 = vector.broadcast %3 : vector<1x1024xf32> to vector<8x1024xf32>
    %5 = arith.addf %2, %4 : vector<8x1024xf32>
    %6 = vector.extract_strided_slice %5 {offsets = [0, 0], sizes = [8, 512], strides = [1, 1]} : vector<8x1024xf32> to vector<8x512xf32>
    %7 = vector.extract_strided_slice %5 {offsets = [0, 512], sizes = [8, 512], strides = [1, 1]} : vector<8x1024xf32> to vector<8x512xf32>
    %8 = arith.negf %6 : vector<8x512xf32>
    %9 = math.exp %8 : vector<8x512xf32>
    %cst_5 = arith.constant 1.000000e+00 : f32
    %10 = vector.broadcast %cst_5 : f32 to vector<8x512xf32>
    %11 = arith.addf %10, %9 : vector<8x512xf32>
    %12 = arith.divf %10, %11 : vector<8x512xf32>
    %13 = arith.mulf %6, %12 : vector<8x512xf32>
    %14 = arith.mulf %13, %7 : vector<8x512xf32>
    %c0_6 = arith.constant 0 : index
    %c0_7 = arith.constant 0 : index
    %15 = vector.load %arg4[%c0_6, %c0_7] : memref<512x128xf32, #tpu.memory_space<vmem>>, vector<512x128xf32>
    %cst_8 = arith.constant dense<0.000000e+00> : vector<8x128xf32>
    %16 = tpu.matmul %14, %15, %cst_8 {dimension_numbers = #tpu.dot_dimension_numbers<[1], [0], [0], [1], [0, 0, 1, 1], [], []>} : vector<8x512xf32>, vector<512x128xf32>, vector<8x128xf32> -> vector<8x128xf32>
    %c0_9 = arith.constant 0 : index
    %c0_10 = arith.constant 0 : index
    %17 = vector.load %arg5[%c0_9, %c0_10] : memref<1x128xf32, #tpu.memory_space<vmem>>, vector<1x128xf32>
    %18 = vector.broadcast %17 : vector<1x128xf32> to vector<8x128xf32>
    %19 = arith.addf %16, %18 : vector<8x128xf32>
    %c0_11 = arith.constant 0 : index
    %c0_12 = arith.constant 0 : index
    %20 = vector.load %arg6[%c0_11, %c0_12] : memref<8x128xf32, #tpu.memory_space<vmem>>, vector<8x128xf32>
    tpu.vector_store %arg6[%c0_11, %c0_12], %19 {strides = array<i32>} : memref<8x128xf32, #tpu.memory_space<vmem>>, vector<8x128xf32>,
    return
  }
  func.func @transform_0(%arg0: i32) -> (i32, i32) {
    %c0_i32 = arith.constant 0 : i32
    %c0_i32_0 = arith.constant 0 : i32
    return %arg0, %c0_i32 : i32, i32
  }
  func.func @transform_1(%arg0: i32) -> (i32, i32) {
    %c0_i32 = arith.constant 0 : i32
    %c0_i32_0 = arith.constant 0 : i32
    %c0_i32_1 = arith.constant 0 : i32
    return %c0_i32, %c0_i32_0 : i32, i32
  }
  func.func @transform_2(%arg0: i32) -> (i32, i32) {
    %c0_i32 = arith.constant 0 : i32
    %c0_i32_0 = arith.constant 0 : i32
    %c0_i32_1 = arith.constant 0 : i32
    return %c0_i32, %c0_i32_0 : i32, i32
  }
  func.func @transform_3(%arg0: i32) -> (i32, i32) {
    %c0_i32 = arith.constant 0 : i32
    %c0_i32_0 = arith.constant 0 : i32
    %c0_i32_1 = arith.constant 0 : i32
    return %c0_i32, %c0_i32_0 : i32, i32
  }
  func.func @transform_4(%arg0: i32) -> (i32, i32) {
    %c0_i32 = arith.constant 0 : i32
    %c0_i32_0 = arith.constant 0 : i32
    %c0_i32_1 = arith.constant 0 : i32
    return %c0_i32, %c0_i32_0 : i32, i32
  }
  func.func @transform_5(%arg0: i32) -> (i32, i32) {
    %c0_i32 = arith.constant 0 : i32
    %c0_i32_0 = arith.constant 0 : i32
    return %arg0, %c0_i32 : i32, i32
  }
}

</mosaic_0001>

<llo_original>
// kernel: tpu_custom_call.1
$region0: #{tpu_custom_call.1}
  #allocation0 [shape = 'u32[]', space=smem, size = 0x4, offset = 0x4, fixed_abs, tag = 'smem constant byte address 0x4 - core index']
  #allocation1 [shape = 'u32[144,128]{1,0:T(1,128)}', space=vmem, size = 0x12000, scoped, tag = 'internal scratch']
  %s0 = inlined_call_operand.hbm [shape: f32[16,128], index: 0, kind: input, shape index: {}]
  %s1 = inlined_call_operand.hbm [shape: f32[128,1024], index: 1, kind: input, shape index: {}]
  %s2 = inlined_call_operand.hbm [shape: f32[1,1024], index: 2, kind: input, shape index: {}]
  %s3 = inlined_call_operand.hbm [shape: f32[512,128], index: 3, kind: input, shape index: {}]
  %s4 = inlined_call_operand.vmem [shape: f32[1,128], index: 4, kind: input, shape index: {}]
  %s5 = inlined_call_operand.hbm [shape: f32[16,128], index: 5, kind: output, shape index: {}]
  %s6 = sld [smem:[#allocation0]]
  $region69: #{tpu_custom_call.1} parent=0
    _
  %s8 = ssub.s32 1, %s6
  %s9 = scalar_select 0, %s8, %s6
  $region1: #{tpu_custom_call.1} parent=0
    #allocation2 [shape = 'u8[8192]{0}', space=vmem, size = 0x2000, scoped, tag = 'input window, operand 0']
    #allocation3 [shape = 's32[2]{0}', space=sflag, size = 0x8, scoped, tag = 'scoped memory for tpu_custom_call.1']
    #allocation4 [shape = 's32[2]{0}', space=sflag, size = 0x8, scoped, tag = 'scoped memory for tpu_custom_call.1']
    #allocation5 [shape = 'u8[524288]{0}', space=vmem, size = 0x80000, scoped, tag = 'input window, operand 1, single buffered']
    #allocation6 [shape = 's32[1]{0}', space=sflag, size = 0x4, scoped, tag = 'scoped memory for tpu_custom_call.1']
    #allocation7 [shape = 'u8[4096]{0}', space=vmem, size = 0x1000, scoped, tag = 'input window, operand 2, single buffered']
    #allocation8 [shape = 'u8[262144]{0}', space=vmem, size = 0x40000, scoped, tag = 'input window, operand 3, single buffered']
    #allocation9 [shape = 's32[1]{0}', space=sflag, size = 0x4, scoped, tag = 'scoped memory for tpu_custom_call.1']
    #allocation10 [shape = 'u8[8192]{0}', space=vmem, size = 0x2000, scoped, tag = 'output window, operand 0']
    %10 = vsyncpa [#allocation3], 0
    %s11 = scalar_lea.sflag [#allocation3], 1
    %12 = vsyncpa %s11, 0
    %13 = vsyncpa [#allocation6], 0
    %14 = vsyncpa [#allocation9], 0
    %15 = vsyncpa [#allocation4], 0
    %s16 = scalar_lea.sflag [#allocation4], 1
    %17 = vsyncpa %s16, 0
    loop: start=0, step=1, limit=4
    $region2: #{tpu_custom_call.1} parent=1 // loop_pre_header
      _
    $region3: #{tpu_custom_call.1} parent=1 // loop_header
      %s19 = sphi 0, %s23
      %p20 = scmp.ge.s32.totalorder %s19, 4
      %s29 = sphi 0, %s31
      %s32 = sphi 0, %s29
      %s33 = sphi 0, %s32
      %s49 = sphi 0, %s33
      %s53 = sphi 0, %s53
      %s55 = sphi 0, %s53
      %s56 = sphi 0, %s55
      %s70 = sphi 0, %s56
      %s74 = sphi 0, %s74
      %s76 = sphi 0, %s74
      %s77 = sphi 0, %s76
      %s91 = sphi 0, %s77
      %s95 = sphi 0, %s95
      %s97 = sphi 0, %s95
      %s98 = sphi 0, %s97
      %s112 = sphi 0, %s98
      %s116 = sphi 0, %s116
      %s118 = sphi 0, %s116
      %s119 = sphi 0, %s118
      %s133 = sphi 0, %s119
      %s139 = sphi 0, %s141
      %s142 = sphi 0, %s139
      %s143 = sphi 0, %s142
      %s159 = sphi 0, %s143
    $region4: #{tpu_custom_call.1} parent=1 // loop_header_branch
      %22 = sbr.rel (%p20) target = $region8
    $region5: #{tpu_custom_call.1} parent=1 // loop_body
      %s24 = ssub.s32 %s19, 1
      %s25 = ssub.s32 %s19, 2
      %s26 = sadd.s32 %s19, 1
      %s27 = ssub.s32 %s19, %s26
      %p28 = scmp.eq.s32.totalorder %s27, 0
      %s30 = sadd.s32 %s29, 1
      %s31 = scalar_select %p28, %s29, %s30
      %p34 = pneg %p28
      %p35 = scmp.eq.s32.totalorder %s19, 1
      %p36 = por %p34, %p35
      %p37 = scmp.ne.s32.totalorder %s29, %s32
      %p38 = scmp.eq.s32.totalorder %s19, 0
      %p39 = por %p37, %p38
      %p40 = scmp.ne.s32.totalorder %s29, %s32
      %p41 = scmp.eq.s32.totalorder %s24, 1
      %p42 = por %p40, %p41
      %p43 = scmp.ne.s32.totalorder %s32, %s33
      %p44 = scmp.eq.s32.totalorder %s24, 0
      %p45 = por %p43, %p44
      %p46 = scmp.ne.s32.totalorder %s32, %s33
      %p47 = scmp.eq.s32.totalorder %s25, 1
      %p48 = por %p46, %p47
      %p50 = scmp.ne.s32.totalorder %s33, %s49
      %p51 = scmp.eq.s32.totalorder %s25, 0
      %p52 = por %p50, %p51
      %s54 = sadd.s32 %s53, 1
      %p57 = scmp.eq.s32.totalorder %s19, 1
      %p58 = scmp.ne.s32.totalorder %s53, %s55
      %p59 = scmp.eq.s32.totalorder %s19, 0
      %p60 = por %p58, %p59
      %p61 = scmp.ne.s32.totalorder %s53, %s55
      %p62 = scmp.eq.s32.totalorder %s24, 1
      %p63 = por %p61, %p62
      %p64 = scmp.ne.s32.totalorder %s55, %s56
      %p65 = scmp.eq.s32.totalorder %s24, 0
      %p66 = por %p64, %p65
      %p67 = scmp.ne.s32.totalorder %s55, %s56
      %p68 = scmp.eq.s32.totalorder %s25, 1
      %p69 = por %p67, %p68
      %p71 = scmp.ne.s32.totalorder %s56, %s70
      %p72 = scmp.eq.s32.totalorder %s25, 0
      %p73 = por %p71, %p72
      %s75 = sadd.s32 %s74, 1
      %p78 = scmp.eq.s32.totalorder %s19, 1
      %p79 = scmp.ne.s32.totalorder %s74, %s76
      %p80 = scmp.eq.s32.totalorder %s19, 0
      %p81 = por %p79, %p80
      %p82 = scmp.ne.s32.totalorder %s74, %s76
      %p83 = scmp.eq.s32.totalorder %s24, 1
      %p84 = por %p82, %p83
      %p85 = scmp.ne.s32.totalorder %s76, %s77
      %p86 = scmp.eq.s32.totalorder %s24, 0
      %p87 = por %p85, %p86
      %p88 = scmp.ne.s32.totalorder %s76, %s77
      %p89 = scmp.eq.s32.totalorder %s25, 1
      %p90 = por %p88, %p89
      %p92 = scmp.ne.s32.totalorder %s77, %s91
      %p93 = scmp.eq.s32.totalorder %s25, 0
      %p94 = por %p92, %p93
      %s96 = sadd.s32 %s95, 1
      %p99 = scmp.eq.s32.totalorder %s19, 1
      %p100 = scmp.ne.s32.totalorder %s95, %s97
      %p101 = scmp.eq.s32.totalorder %s19, 0
      %p102 = por %p100, %p101
      %p103 = scmp.ne.s32.totalorder %s95, %s97
      %p104 = scmp.eq.s32.totalorder %s24, 1
      %p105 = por %p103, %p104
      %p106 = scmp.ne.s32.totalorder %s97, %s98
      %p107 = scmp.eq.s32.totalorder %s24, 0
      %p108 = por %p106, %p107
      %p109 = scmp.ne.s32.totalorder %s97, %s98
      %p110 = scmp.eq.s32.totalorder %s25, 1
      %p111 = por %p109, %p110
      %p113 = scmp.ne.s32.totalorder %s98, %s112
      %p114 = scmp.eq.s32.totalorder %s25, 0
      %p115 = por %p113, %p114
      %s117 = sadd.s32 %s116, 1
      %p120 = scmp.eq.s32.totalorder %s19, 1
      %p121 = scmp.ne.s32.totalorder %s116, %s118
      %p122 = scmp.eq.s32.totalorder %s19, 0
      %p123 = por %p121, %p122
      %p124 = scmp.ne.s32.totalorder %s116, %s118
      %p125 = scmp.eq.s32.totalorder %s24, 1
      %p126 = por %p124, %p125
      %p127 = scmp.ne.s32.totalorder %s118, %s119
      %p128 = scmp.eq.s32.totalorder %s24, 0
      %p129 = por %p127, %p128
      %p130 = scmp.ne.s32.totalorder %s118, %s119
      %p131 = scmp.eq.s32.totalorder %s25, 1
      %p132 = por %p130, %p131
      %p134 = scmp.ne.s32.totalorder %s119, %s133
      %p135 = scmp.eq.s32.totalorder %s25, 0
      %p136 = por %p134, %p135
      %s137 = ssub.s32 %s19, %s26
      %p138 = scmp.eq.s32.totalorder %s137, 0
      %s140 = sadd.s32 %s139, 1
      %s141 = scalar_select %p138, %s139, %s140
      %p144 = pneg %p138
      %p145 = scmp.eq.s32.totalorder %s19, 1
      %p146 = por %p144, %p145
      %p147 = scmp.ne.s32.totalorder %s139, %s142
      %p148 = scmp.eq.s32.totalorder %s19, 0
      %p149 = por %p147, %p148
      %p150 = scmp.ne.s32.totalorder %s139, %s142
      %p151 = scmp.eq.s32.totalorder %s24, 1
      %p152 = por %p150, %p151
      %p153 = scmp.ne.s32.totalorder %s142, %s143
      %p154 = scmp.eq.s32.totalorder %s24, 0
      %p155 = por %p153, %p154
      %p156 = scmp.ne.s32.totalorder %s142, %s143
      %p157 = scmp.eq.s32.totalorder %s25, 1
      %p158 = por %p156, %p157
      %p160 = scmp.ne.s32.totalorder %s143, %s159
      %p161 = scmp.eq.s32.totalorder %s25, 0
      %p162 = por %p160, %p161
      %p163 = scmp.le.s32.totalorder 1, %s19
      %p164 = scmp.lt.s32.totalorder %s19, 3
      %p165 = pnand %p163, %p164
      %p166 = pneg %p165
      // Predicated region
      $region9: #{tpu_custom_call.1} parent=5 // pred_check
        _
      $region10: #{tpu_custom_call.1} parent=5 // pred_check_branch
        %168 = sbr.rel (%p165) target = $region12
      $region11: #{tpu_custom_call.1} parent=5 // pred_region
        %s169 = ssub.s32 %s19, 1
        // Predicated region
        $region13: #{tpu_custom_call.1} parent=11 // pred_check
          %p170 = pneg %p66
        $region14: #{tpu_custom_call.1} parent=11 // pred_check_branch
          %172 = sbr.rel (%p170) target = $region16
        $region15: #{tpu_custom_call.1} parent=11 // pred_region
          %s174 = ssub.s32 16384, 16384
          %175 = vsyncadd [#allocation6], %s174
          %s176 = sshll.u32 [#allocation5], 4
          %s177 = int_to_ptr.vmem [resolvable:$true] %s176
          %182 = dma.hbm_to_vmem [thread:$0]  %s1, 16384, %s177, [#allocation6], 1024, 1024, 64
        $region16: #{tpu_custom_call.1} parent=11 // pred_fallthru
          _
        // Predicated region
        $region17: #{tpu_custom_call.1} parent=11 // pred_check
          %p183 = pneg %p87
        $region18: #{tpu_custom_call.1} parent=11 // pred_check_branch
          %185 = sbr.rel (%p183) target = $region20
        $region19: #{tpu_custom_call.1} parent=11 // pred_region
          %s187 = ssub.s32 128, 128
          %188 = vsyncadd [#allocation6], %s187
          %s190 = sshll.u32 [#allocation7], 4
          %s191 = int_to_ptr.vmem [resolvable:$true] %s190
          %193 = dma.hbm_to_vmem [thread:$0]  %s2, 128, %s191, [#allocation6]
        $region20: #{tpu_custom_call.1} parent=11 // pred_fallthru
          _
        // Predicated region
        $region21: #{tpu_custom_call.1} parent=11 // pred_check
          %p194 = pneg %p108
        $region22: #{tpu_custom_call.1} parent=11 // pred_check_branch
          %196 = sbr.rel (%p194) target = $region24
        $region23: #{tpu_custom_call.1} parent=11 // pred_region
          %s198 = ssub.s32 8192, 8192
          %199 = vsyncadd [#allocation9], %s198
          %s200 = sshll.u32 [#allocation8], 4
          %s201 = int_to_ptr.vmem [resolvable:$true] %s200
          %206 = dma.hbm_to_vmem [thread:$0]  %s3, 8192, %s201, [#allocation9], 128, 128, 8
        $region24: #{tpu_custom_call.1} parent=11 // pred_fallthru
          _
        // Predicated region
        $region25: #{tpu_custom_call.1} parent=11 // pred_check
          %p207 = pneg %p129
        $region26: #{tpu_custom_call.1} parent=11 // pred_check_branch
          %209 = sbr.rel (%p207) target = $region28
        $region27: #{tpu_custom_call.1} parent=11 // pred_region
          _
        $region28: #{tpu_custom_call.1} parent=11 // pred_fallthru
          _
      $region12: #{tpu_custom_call.1} parent=5 // pred_fallthru
        _
      %p210 = scmp.lt.s32.totalorder %s19, 2
      // Predicated region
      $region29: #{tpu_custom_call.1} parent=5 // pred_check
        %p211 = pneg %p210
      $region30: #{tpu_custom_call.1} parent=5 // pred_check_branch
        %213 = sbr.rel (%p211) target = $region32
      $region31: #{tpu_custom_call.1} parent=5 // pred_region
        // Predicated region
        $region33: #{tpu_custom_call.1} parent=31 // pred_check
          %p214 = pneg %p39
        $region34: #{tpu_custom_call.1} parent=31 // pred_check_branch
          %216 = sbr.rel (%p214) target = $region36
        $region35: #{tpu_custom_call.1} parent=31 // pred_region
          %s217 = sand.u32 %s29, 1
          %s218 = scalar_lea.sflag [#allocation3], %s217
          %s219 = sand.u32 %s29, 1
          %s220 = smul.addr %s219, 8
          %s221 = scalar_lea.vmem [#allocation2], %s220
          %s223 = ssub.s32 128, 128
          %224 = vsyncadd %s218, %s223
          %s225 = smul.addr %s19, 128
          %s226 = scalar_lea.hbm %s0, %s225
          %s228 = sshll.u32 %s221, 4
          %s229 = int_to_ptr.vmem [resolvable:$true] %s228
          %231 = dma.hbm_to_vmem [thread:$0]  %s226, 128, %s229, %s218
        $region36: #{tpu_custom_call.1} parent=31 // pred_fallthru
          _
      $region32: #{tpu_custom_call.1} parent=5 // pred_fallthru
        _
      %p232 = scmp.le.s32.totalorder 1, %s19
      %p233 = scmp.lt.s32.totalorder %s19, 3
      %p234 = pnand %p232, %p233
      %p235 = pneg %p234
      // Predicated region
      $region37: #{tpu_custom_call.1} parent=5 // pred_check
        _
      $region38: #{tpu_custom_call.1} parent=5 // pred_check_branch
        %237 = sbr.rel (%p234) target = $region40
      $region39: #{tpu_custom_call.1} parent=5 // pred_region
        %s238 = ssub.s32 %s19, 1
        %s239 = sand.u32 %s32, 1
        %s240 = scalar_lea.sflag [#allocation3], %s239
        %s241 = sand.u32 %s32, 1
        %s242 = smul.addr %s241, 8
        %s243 = scalar_lea.vmem [#allocation2], %s242
        // Predicated region
        $region41: #{tpu_custom_call.1} parent=39 // pred_check
          %p244 = pneg %p45
        $region42: #{tpu_custom_call.1} parent=39 // pred_check_branch
          %246 = sbr.rel (%p244) target = $region44
        $region43: #{tpu_custom_call.1} parent=39 // pred_region
          %247 = dma.done %s240, 128
        $region44: #{tpu_custom_call.1} parent=39 // pred_fallthru
          _
        // Predicated region
        $region45: #{tpu_custom_call.1} parent=39 // pred_check
          %p248 = pneg %p66
        $region46: #{tpu_custom_call.1} parent=39 // pred_check_branch
          %250 = sbr.rel (%p248) target = $region48
        $region47: #{tpu_custom_call.1} parent=39 // pred_region
          %251 = dma.done [#allocation6], 16384
        $region48: #{tpu_custom_call.1} parent=39 // pred_fallthru
          _
        // Predicated region
        $region49: #{tpu_custom_call.1} parent=39 // pred_check
          %p252 = pneg %p87
        $region50: #{tpu_custom_call.1} parent=39 // pred_check_branch
          %254 = sbr.rel (%p252) target = $region52
        $region51: #{tpu_custom_call.1} parent=39 // pred_region
          %255 = dma.done [#allocation6], 128
        $region52: #{tpu_custom_call.1} parent=39 // pred_fallthru
          _
        // Predicated region
        $region53: #{tpu_custom_call.1} parent=39 // pred_check
          %p256 = pneg %p108
        $region54: #{tpu_custom_call.1} parent=39 // pred_check_branch
          %258 = sbr.rel (%p256) target = $region56
        $region55: #{tpu_custom_call.1} parent=39 // pred_region
          %259 = dma.done [#allocation9], 8192
        $region56: #{tpu_custom_call.1} parent=39 // pred_fallthru
          _
        %s260 = sand.u32 %s32, 1
        %s261 = scalar_lea.sflag [#allocation3], %s260
        %s262 = sand.u32 %s32, 1
        %s263 = smul.addr %s262, 8
        %s264 = scalar_lea.vmem [#allocation2], %s263
        %p265 = pneg %p45
        %p266 = pneg %p42
        %p267 = pneg %p66
        %p268 = pneg %p63
        %p269 = pneg %p87
        %p270 = pneg %p84
        %p271 = pneg %p108
        %p272 = pneg %p105
        %p273 = pneg %p129
        %p274 = pneg %p126
        %p275 = pneg %p155
        %p276 = pneg %p152
        %s277 = sand.u32 %s142, 1
        %s278 = scalar_lea.sflag [#allocation4], %s277
        %s279 = sand.u32 %s142, 1
        %s280 = smul.addr %s279, 8
        %s281 = scalar_lea.vmem [#allocation10], %s280
        %v282 = vld [vmem:[%s243] sm:$0xff]
        %v283 = vld [vmem:[#allocation5] sm:$0xff]
        %v284 = vld [vmem:[#allocation5 + $0x8] sm:$0xff]
        %v285 = vld [vmem:[#allocation5 + $0x10] sm:$0xff]
        %v286 = vld [vmem:[#allocation5 + $0x18] sm:$0xff]
        %v287 = vld [vmem:[#allocation5 + $0x20] sm:$0xff]
        %v288 = vld [vmem:[#allocation5 + $0x28] sm:$0xff]
        %v289 = vld [vmem:[#allocation5 + $0x30] sm:$0xff]
        %v290 = vld [vmem:[#allocation5 + $0x38] sm:$0xff]
        %v291 = vld [vmem:[#allocation5 + $0x40] sm:$0xff]
        %v292 = vld [vmem:[#allocation5 + $0x48] sm:$0xff]
        %v293 = vld [vmem:[#allocation5 + $0x50] sm:$0xff]
        %v294 = vld [vmem:[#allocation5 + $0x58] sm:$0xff]
        %v295 = vld [vmem:[#allocation5 + $0x60] sm:$0xff]
        %v296 = vld [vmem:[#allocation5 + $0x68] sm:$0xff]
        %v297 = vld [vmem:[#allocation5 + $0x70] sm:$0xff]
        %v298 = vld [vmem:[#allocation5 + $0x78] sm:$0xff]
        %v299 = vld [vmem:[#allocation5 + $0x80] sm:$0xff]
        %v300 = vld [vmem:[#allocation5 + $0x88] sm:$0xff]
        %v301 = vld [vmem:[#allocation5 + $0x90] sm:$0xff]
        %v302 = vld [vmem:[#allocation5 + $0x98] sm:$0xff]
        %v303 = vld [vmem:[#allocation5 + $0xa0] sm:$0xff]
        %v304 = vld [vmem:[#allocation5 + $0xa8] sm:$0xff]
        %v305 = vld [vmem:[#allocation5 + $0xb0] sm:$0xff]
        %v306 = vld [vmem:[#allocation5 + $0xb8] sm:$0xff]
        %v307 = vld [vmem:[#allocation5 + $0xc0] sm:$0xff]
        %v308 = vld [vmem:[#allocation5 + $0xc8] sm:$0xff]
        %v309 = vld [vmem:[#allocation5 + $0xd0] sm:$0xff]
        %v310 = vld [vmem:[#allocation5 + $0xd8] sm:$0xff]
        %v311 = vld [vmem:[#allocation5 + $0xe0] sm:$0xff]
        %v312 = vld [vmem:[#allocation5 + $0xe8] sm:$0xff]
        %v313 = vld [vmem:[#allocation5 + $0xf0] sm:$0xff]
        %v314 = vld [vmem:[#allocation5 + $0xf8] sm:$0xff]
        %v315 = vld [vmem:[#allocation5 + $0x100] sm:$0xff]
        %v316 = vld [vmem:[#allocation5 + $0x108] sm:$0xff]
        %v317 = vld [vmem:[#allocation5 + $0x110] sm:$0xff]
        %v318 = vld [vmem:[#allocation5 + $0x118] sm:$0xff]
        %v319 = vld [vmem:[#allocation5 + $0x120] sm:$0xff]
        %v320 = vld [vmem:[#allocation5 + $0x128] sm:$0xff]
        %v321 = vld [vmem:[#allocation5 + $0x130] sm:$0xff]
        %v322 = vld [vmem:[#allocation5 + $0x138] sm:$0xff]
        %v323 = vld [vmem:[#allocation5 + $0x140] sm:$0xff]
        %v324 = vld [vmem:[#allocation5 + $0x148] sm:$0xff]
        %v325 = vld [vmem:[#allocation5 + $0x150] sm:$0xff]
        %v326 = vld [vmem:[#allocation5 + $0x158] sm:$0xff]
        %v327 = vld [vmem:[#allocation5 + $0x160] sm:$0xff]
        %v328 = vld [vmem:[#allocation5 + $0x168] sm:$0xff]
        %v329 = vld [vmem:[#allocation5 + $0x170] sm:$0xff]
        %v330 = vld [vmem:[#allocation5 + $0x178] sm:$0xff]
        %v331 = vld [vmem:[#allocation5 + $0x180] sm:$0xff]
        %v332 = vld [vmem:[#allocation5 + $0x188] sm:$0xff]
        %v333 = vld [vmem:[#allocation5 + $0x190] sm:$0xff]
        %v334 = vld [vmem:[#allocation5 + $0x198] sm:$0xff]
        %v335 = vld [vmem:[#allocation5 + $0x1a0] sm:$0xff]
        %v336 = vld [vmem:[#allocation5 + $0x1a8] sm:$0xff]
        %v337 = vld [vmem:[#allocation5 + $0x1b0] sm:$0xff]
        %v338 = vld [vmem:[#allocation5 + $0x1b8] sm:$0xff]
        %v339 = vld [vmem:[#allocation5 + $0x1c0] sm:$0xff]
        %v340 = vld [vmem:[#allocation5 + $0x1c8] sm:$0xff]
        %v341 = vld [vmem:[#allocation5 + $0x1d0] sm:$0xff]
        %v342 = vld [vmem:[#allocation5 + $0x1d8] sm:$0xff]
        %v343 = vld [vmem:[#allocation5 + $0x1e0] sm:$0xff]
        %v344 = vld [vmem:[#allocation5 + $0x1e8] sm:$0xff]
        %v345 = vld [vmem:[#allocation5 + $0x1f0] sm:$0xff]
        %v346 = vld [vmem:[#allocation5 + $0x1f8] sm:$0xff]
        %v347 = vld [vmem:[#allocation5 + $0x200] sm:$0xff]
        %v348 = vld [vmem:[#allocation5 + $0x208] sm:$0xff]
        %v349 = vld [vmem:[#allocation5 + $0x210] sm:$0xff]
        %v350 = vld [vmem:[#allocation5 + $0x218] sm:$0xff]
        %v351 = vld [vmem:[#allocation5 + $0x220] sm:$0xff]
        %v352 = vld [vmem:[#allocation5 + $0x228] sm:$0xff]
        %v353 = vld [vmem:[#allocation5 + $0x230] sm:$0xff]
        %v354 = vld [vmem:[#allocation5 + $0x238] sm:$0xff]
        %v355 = vld [vmem:[#allocation5 + $0x240] sm:$0xff]
        %v356 = vld [vmem:[#allocation5 + $0x248] sm:$0xff]
        %v357 = vld [vmem:[#allocation5 + $0x250] sm:$0xff]
        %v358 = vld [vmem:[#allocation5 + $0x258] sm:$0xff]
        %v359 = vld [vmem:[#allocation5 + $0x260] sm:$0xff]
        %v360 = vld [vmem:[#allocation5 + $0x268] sm:$0xff]
        %v361 = vld [vmem:[#allocation5 + $0x270] sm:$0xff]
        %v362 = vld [vmem:[#allocation5 + $0x278] sm:$0xff]
        %v363 = vld [vmem:[#allocation5 + $0x280] sm:$0xff]
        %v364 = vld [vmem:[#allocation5 + $0x288] sm:$0xff]
        %v365 = vld [vmem:[#allocation5 + $0x290] sm:$0xff]
        %v366 = vld [vmem:[#allocation5 + $0x298] sm:$0xff]
        %v367 = vld [vmem:[#allocation5 + $0x2a0] sm:$0xff]
        %v368 = vld [vmem:[#allocation5 + $0x2a8] sm:$0xff]
        %v369 = vld [vmem:[#allocation5 + $0x2b0] sm:$0xff]
        %v370 = vld [vmem:[#allocation5 + $0x2b8] sm:$0xff]
        %v371 = vld [vmem:[#allocation5 + $0x2c0] sm:$0xff]
        %v372 = vld [vmem:[#allocation5 + $0x2c8] sm:$0xff]
        %v373 = vld [vmem:[#allocation5 + $0x2d0] sm:$0xff]
        %v374 = vld [vmem:[#allocation5 + $0x2d8] sm:$0xff]
        %v375 = vld [vmem:[#allocation5 + $0x2e0] sm:$0xff]
        %v376 = vld [vmem:[#allocation5 + $0x2e8] sm:$0xff]
        %v377 = vld [vmem:[#allocation5 + $0x2f0] sm:$0xff]
        %v378 = vld [vmem:[#allocation5 + $0x2f8] sm:$0xff]
        %v379 = vld [vmem:[#allocation5 + $0x300] sm:$0xff]
        %v380 = vld [vmem:[#allocation5 + $0x308] sm:$0xff]
        %v381 = vld [vmem:[#allocation5 + $0x310] sm:$0xff]
        %v382 = vld [vmem:[#allocation5 + $0x318] sm:$0xff]
        %v383 = vld [vmem:[#allocation5 + $0x320] sm:$0xff]
        %v384 = vld [vmem:[#allocation5 + $0x328] sm:$0xff]
        %v385 = vld [vmem:[#allocation5 + $0x330] sm:$0xff]
        %v386 = vld [vmem:[#allocation5 + $0x338] sm:$0xff]
        %v387 = vld [vmem:[#allocation5 + $0x340] sm:$0xff]
        %v388 = vld [vmem:[#allocation5 + $0x348] sm:$0xff]
        %v389 = vld [vmem:[#allocation5 + $0x350] sm:$0xff]
        %v390 = vld [vmem:[#allocation5 + $0x358] sm:$0xff]
        %v391 = vld [vmem:[#allocation5 + $0x360] sm:$0xff]
        %v392 = vld [vmem:[#allocation5 + $0x368] sm:$0xff]
        %v393 = vld [vmem:[#allocation5 + $0x370] sm:$0xff]
        %v394 = vld [vmem:[#allocation5 + $0x378] sm:$0xff]
        %v395 = vld [vmem:[#allocation5 + $0x380] sm:$0xff]
        %v396 = vld [vmem:[#allocation5 + $0x388] sm:$0xff]
        %v397 = vld [vmem:[#allocation5 + $0x390] sm:$0xff]
        %v398 = vld [vmem:[#allocation5 + $0x398] sm:$0xff]
        %v399 = vld [vmem:[#allocation5 + $0x3a0] sm:$0xff]
        %v400 = vld [vmem:[#allocation5 + $0x3a8] sm:$0xff]
        %v401 = vld [vmem:[#allocation5 + $0x3b0] sm:$0xff]
        %v402 = vld [vmem:[#allocation5 + $0x3b8] sm:$0xff]
        %v403 = vld [vmem:[#allocation5 + $0x3c0] sm:$0xff]
        %v404 = vld [vmem:[#allocation5 + $0x3c8] sm:$0xff]
        %v405 = vld [vmem:[#allocation5 + $0x3d0] sm:$0xff]
        %v406 = vld [vmem:[#allocation5 + $0x3d8] sm:$0xff]
        %v407 = vld [vmem:[#allocation5 + $0x3e0] sm:$0xff]
        %v408 = vld [vmem:[#allocation5 + $0x3e8] sm:$0xff]
        %v409 = vld [vmem:[#allocation5 + $0x3f0] sm:$0xff]
        %v410 = vld [vmem:[#allocation5 + $0x3f8] sm:$0xff]
        %v411 = vld [vmem:[#allocation7] sm:$0xff]
        %v413 = vlaneseq
        %v414 = vshrl.u32 %v413, 7
        %v415 = vsub.s32 0, %v414
        %v416 = vrot.slane %v411, %v415
        %v417 = vlaneseq
        %v418 = vshrl.u32 %v417, 7
        %v419 = vsub.s32 1, %v418
        %v420 = vrot.slane %v411, %v419
        %v421 = vlaneseq
        %v422 = vshrl.u32 %v421, 7
        %v423 = vsub.s32 2, %v422
        %v424 = vrot.slane %v411, %v423
        %v425 = vlaneseq
        %v426 = vshrl.u32 %v425, 7
        %v427 = vsub.s32 3, %v426
        %v428 = vrot.slane %v411, %v427
        %v429 = vlaneseq
        %v430 = vshrl.u32 %v429, 7
        %v431 = vsub.s32 4, %v430
        %v432 = vrot.slane %v411, %v431
        %v433 = vlaneseq
        %v434 = vshrl.u32 %v433, 7
        %v435 = vsub.s32 5, %v434
        %v436 = vrot.slane %v411, %v435
        %v437 = vlaneseq
        %v438 = vshrl.u32 %v437, 7
        %v439 = vsub.s32 6, %v438
        %v440 = vrot.slane %v411, %v439
        %v441 = vlaneseq
        %v442 = vshrl.u32 %v441, 7
        %v443 = vsub.s32 7, %v442
        %v444 = vrot.slane %v411, %v443
        %453 = vmatprep.subr.mxu0 %v284
        %454 = vmatpush1.msra.mxu0 %v283
        %455 = vmatprep.subr.mxu0 %v292
        %456 = vmatpush1.msra.mxu0 %v291
        %457 = vmatprep.subr.mxu0 %v300
        %458 = vmatpush1.msra.mxu0 %v299
        %459 = vmatprep.subr.mxu0 %v308
        %460 = vmatpush1.msra.mxu0 %v307
        %461 = vmatprep.subr.mxu0 %v316
        %462 = vmatpush1.msra.mxu0 %v315
        %463 = vmatprep.subr.mxu0 %v324
        %464 = vmatpush1.msra.mxu0 %v323
        %465 = vmatprep.subr.mxu0 %v332
        %466 = vmatpush1.msra.mxu0 %v331
        %467 = vmatprep.subr.mxu0 %v340
        %468 = vmatpush1.msra.mxu0 %v339
        %469 = vmatprep.subr.mxu0 %v348
        %470 = vmatpush1.msra.mxu0 %v347
        %471 = vmatprep.subr.mxu0 %v356
        %472 = vmatpush1.msra.mxu0 %v355
        %473 = vmatprep.subr.mxu0 %v364
        %474 = vmatpush1.msra.mxu0 %v363
        %475 = vmatprep.subr.mxu0 %v372
        %476 = vmatpush1.msra.mxu0 %v371
        %477 = vmatprep.subr.mxu0 %v380
        %478 = vmatpush1.msra.mxu0 %v379
        %479 = vmatprep.subr.mxu0 %v388
        %480 = vmatpush1.msra.mxu0 %v387
        %481 = vmatprep.subr.mxu0 %v396
        %482 = vmatpush1.msra.mxu0 %v395
        %483 = vmatprep.subr.mxu0 %v404
        %484 = vmatpush1.msra.mxu0 %v403
        %485 = vmatprep.subr.mxu0 0.0
        %486 = vmatpush1.msra.mxu0 0.0
        %487 = vmatprep.subr.mxu0 0.0
        %488 = vmatpush1.msra.mxu0 0.0
        %489 = vmatprep.subr.mxu0 0.0
        %490 = vmatpush1.msra.mxu0 0.0
        %491 = vmatprep.subr.mxu0 0.0
        %492 = vmatpush1.msra.mxu0 0.0
        %493 = vmatprep.subr.mxu0 0.0
        %494 = vmatpush1.msra.mxu0 0.0
        %495 = vmatprep.subr.mxu0 0.0
        %496 = vmatpush1.msra.mxu0 0.0
        %497 = vmatprep.subr.mxu0 0.0
        %498 = vmatpush1.msra.mxu0 0.0
        %499 = vmatprep.subr.mxu0 0.0
        %500 = vmatpush1.msra.mxu0 0.0
        %501 = vmatprep.subr.mxu0 0.0
        %502 = vmatpush1.msra.mxu0 0.0
        %503 = vmatprep.subr.mxu0 0.0
        %504 = vmatpush1.msra.mxu0 0.0
        %505 = vmatprep.subr.mxu0 0.0
        %506 = vmatpush1.msra.mxu0 0.0
        %507 = vmatprep.subr.mxu0 0.0
        %508 = vmatpush1.msra.mxu0 0.0
        %509 = vmatprep.subr.mxu0 0.0
        %510 = vmatpush1.msra.mxu0 0.0
        %511 = vmatprep.subr.mxu0 0.0
        %512 = vmatpush1.msra.mxu0 0.0
        %513 = vmatprep.subr.mxu0 0.0
        %514 = vmatpush1.msra.mxu0 0.0
        %515 = vmatprep.subr.mxu0 0.0
        %516 = vmatpush1.msra.mxu0 0.0
        %517 = vmatprep.mubr.f32.mxu0 0.0
        %518 = vmatmul.mubr.f32.gmra.mrb[0].mxu0 %v282
        %v519 = vpop.f32.mrb[0].mxu0
        %v520 = vadd.f32 %v416, %v519
        %v521 = vpop.f32.mrb[0].mxu0
        %v522 = vadd.f32 %v420, %v521
        %523 = vdwg.mxu0
        %524 = vmatprep.subr.mxu0 %v286
        %525 = vmatpush1.msra.mxu0 %v285
        %526 = vmatprep.subr.mxu0 %v294
        %527 = vmatpush1.msra.mxu0 %v293
        %528 = vmatprep.subr.mxu0 %v302
        %529 = vmatpush1.msra.mxu0 %v301
        %530 = vmatprep.subr.mxu0 %v310
        %531 = vmatpush1.msra.mxu0 %v309
        %532 = vmatprep.subr.mxu0 %v318
        %533 = vmatpush1.msra.mxu0 %v317
        %534 = vmatprep.subr.mxu0 %v326
        %535 = vmatpush1.msra.mxu0 %v325
        %536 = vmatprep.subr.mxu0 %v334
        %537 = vmatpush1.msra.mxu0 %v333
        %538 = vmatprep.subr.mxu0 %v342
        %539 = vmatpush1.msra.mxu0 %v341
        %540 = vmatprep.subr.mxu0 %v350
        %541 = vmatpush1.msra.mxu0 %v349
        %542 = vmatprep.subr.mxu0 %v358
        %543 = vmatpush1.msra.mxu0 %v357
        %544 = vmatprep.subr.mxu0 %v366
        %545 = vmatpush1.msra.mxu0 %v365
        %546 = vmatprep.subr.mxu0 %v374
        %547 = vmatpush1.msra.mxu0 %v373
        %548 = vmatprep.subr.mxu0 %v382
        %549 = vmatpush1.msra.mxu0 %v381
        %550 = vmatprep.subr.mxu0 %v390
        %551 = vmatpush1.msra.mxu0 %v389
        %552 = vmatprep.subr.mxu0 %v398
        %553 = vmatpush1.msra.mxu0 %v397
        %554 = vmatprep.subr.mxu0 %v406
        %555 = vmatpush1.msra.mxu0 %v405
        %556 = vmatprep.subr.mxu0 0.0
        %557 = vmatpush1.msra.mxu0 0.0
        %558 = vmatprep.subr.mxu0 0.0
        %559 = vmatpush1.msra.mxu0 0.0
        %560 = vmatprep.subr.mxu0 0.0
        %561 = vmatpush1.msra.mxu0 0.0
        %562 = vmatprep.subr.mxu0 0.0
        %563 = vmatpush1.msra.mxu0 0.0
        %564 = vmatprep.subr.mxu0 0.0
        %565 = vmatpush1.msra.mxu0 0.0
        %566 = vmatprep.subr.mxu0 0.0
        %567 = vmatpush1.msra.mxu0 0.0
        %568 = vmatprep.subr.mxu0 0.0
        %569 = vmatpush1.msra.mxu0 0.0
        %570 = vmatprep.subr.mxu0 0.0
        %571 = vmatpush1.msra.mxu0 0.0
        %572 = vmatprep.subr.mxu0 0.0
        %573 = vmatpush1.msra.mxu0 0.0
        %574 = vmatprep.subr.mxu0 0.0
        %575 = vmatpush1.msra.mxu0 0.0
        %576 = vmatprep.subr.mxu0 0.0
        %577 = vmatpush1.msra.mxu0 0.0
        %578 = vmatprep.subr.mxu0 0.0
        %579 = vmatpush1.msra.mxu0 0.0
        %580 = vmatprep.subr.mxu0 0.0
        %581 = vmatpush1.msra.mxu0 0.0
        %582 = vmatprep.subr.mxu0 0.0
        %583 = vmatpush1.msra.mxu0 0.0
        %584 = vmatprep.subr.mxu0 0.0
        %585 = vmatpush1.msra.mxu0 0.0
        %586 = vmatprep.subr.mxu0 0.0
        %587 = vmatpush1.msra.mxu0 0.0
        %588 = vmatprep.mubr.f32.mxu0 0.0
        %589 = vmatmul.mubr.f32.gmra.mrb[0].mxu0 %v282
        %v590 = vpop.f32.mrb[0].mxu0
        %v591 = vadd.f32 %v424, %v590
        %v592 = vpop.f32.mrb[0].mxu0
        %v593 = vadd.f32 %v428, %v592
        %594 = vdwg.mxu0
        %595 = vmatprep.subr.mxu0 %v288
        %596 = vmatpush1.msra.mxu0 %v287
        %597 = vmatprep.subr.mxu0 %v296
        %598 = vmatpush1.msra.mxu0 %v295
        %599 = vmatprep.subr.mxu0 %v304
        %600 = vmatpush1.msra.mxu0 %v303
        %601 = vmatprep.subr.mxu0 %v312
        %602 = vmatpush1.msra.mxu0 %v311
        %603 = vmatprep.subr.mxu0 %v320
        %604 = vmatpush1.msra.mxu0 %v319
        %605 = vmatprep.subr.mxu0 %v328
        %606 = vmatpush1.msra.mxu0 %v327
        %607 = vmatprep.subr.mxu0 %v336
        %608 = vmatpush1.msra.mxu0 %v335
        %609 = vmatprep.subr.mxu0 %v344
        %610 = vmatpush1.msra.mxu0 %v343
        %611 = vmatprep.subr.mxu0 %v352
        %612 = vmatpush1.msra.mxu0 %v351
        %613 = vmatprep.subr.mxu0 %v360
        %614 = vmatpush1.msra.mxu0 %v359
        %615 = vmatprep.subr.mxu0 %v368
        %616 = vmatpush1.msra.mxu0 %v367
        %617 = vmatprep.subr.mxu0 %v376
        %618 = vmatpush1.msra.mxu0 %v375
        %619 = vmatprep.subr.mxu0 %v384
        %620 = vmatpush1.msra.mxu0 %v383
        %621 = vmatprep.subr.mxu0 %v392
        %622 = vmatpush1.msra.mxu0 %v391
        %623 = vmatprep.subr.mxu0 %v400
        %624 = vmatpush1.msra.mxu0 %v399
        %625 = vmatprep.subr.mxu0 %v408
        %626 = vmatpush1.msra.mxu0 %v407
        %627 = vmatprep.subr.mxu0 0.0
        %628 = vmatpush1.msra.mxu0 0.0
        %629 = vmatprep.subr.mxu0 0.0
        %630 = vmatpush1.msra.mxu0 0.0
        %631 = vmatprep.subr.mxu0 0.0
        %632 = vmatpush1.msra.mxu0 0.0
        %633 = vmatprep.subr.mxu0 0.0
        %634 = vmatpush1.msra.mxu0 0.0
        %635 = vmatprep.subr.mxu0 0.0
        %636 = vmatpush1.msra.mxu0 0.0
        %637 = vmatprep.subr.mxu0 0.0
        %638 = vmatpush1.msra.mxu0 0.0
        %639 = vmatprep.subr.mxu0 0.0
        %640 = vmatpush1.msra.mxu0 0.0
        %641 = vmatprep.subr.mxu0 0.0
        %642 = vmatpush1.msra.mxu0 0.0
        %643 = vmatprep.subr.mxu0 0.0
        %644 = vmatpush1.msra.mxu0 0.0
        %645 = vmatprep.subr.mxu0 0.0
        %646 = vmatpush1.msra.mxu0 0.0
        %647 = vmatprep.subr.mxu0 0.0
        %648 = vmatpush1.msra.mxu0 0.0
        %649 = vmatprep.subr.mxu0 0.0
        %650 = vmatpush1.msra.mxu0 0.0
        %651 = vmatprep.subr.mxu0 0.0
        %652 = vmatpush1.msra.mxu0 0.0
        %653 = vmatprep.subr.mxu0 0.0
        %654 = vmatpush1.msra.mxu0 0.0
        %655 = vmatprep.subr.mxu0 0.0
        %656 = vmatpush1.msra.mxu0 0.0
        %657 = vmatprep.subr.mxu0 0.0
        %658 = vmatpush1.msra.mxu0 0.0
        %659 = vmatprep.mubr.f32.mxu0 0.0
        %660 = vmatmul.mubr.f32.gmra.mrb[0].mxu0 %v282
        %v661 = vpop.f32.mrb[0].mxu0
        %v662 = vadd.f32 %v432, %v661
        %v663 = vpop.f32.mrb[0].mxu0
        %v664 = vadd.f32 %v436, %v663
        %665 = vdwg.mxu0
        %666 = vmatprep.subr.mxu0 %v290
        %667 = vmatpush1.msra.mxu0 %v289
        %668 = vmatprep.subr.mxu0 %v298
        %669 = vmatpush1.msra.mxu0 %v297
        %670 = vmatprep.subr.mxu0 %v306
        %671 = vmatpush1.msra.mxu0 %v305
        %672 = vmatprep.subr.mxu0 %v314
        %673 = vmatpush1.msra.mxu0 %v313
        %674 = vmatprep.subr.mxu0 %v322
        %675 = vmatpush1.msra.mxu0 %v321
        %676 = vmatprep.subr.mxu0 %v330
        %677 = vmatpush1.msra.mxu0 %v329
        %678 = vmatprep.subr.mxu0 %v338
        %679 = vmatpush1.msra.mxu0 %v337
        %680 = vmatprep.subr.mxu0 %v346
        %681 = vmatpush1.msra.mxu0 %v345
        %682 = vmatprep.subr.mxu0 %v354
        %683 = vmatpush1.msra.mxu0 %v353
        %684 = vmatprep.subr.mxu0 %v362
        %685 = vmatpush1.msra.mxu0 %v361
        %686 = vmatprep.subr.mxu0 %v370
        %687 = vmatpush1.msra.mxu0 %v369
        %688 = vmatprep.subr.mxu0 %v378
        %689 = vmatpush1.msra.mxu0 %v377
        %690 = vmatprep.subr.mxu0 %v386
        %691 = vmatpush1.msra.mxu0 %v385
        %692 = vmatprep.subr.mxu0 %v394
        %693 = vmatpush1.msra.mxu0 %v393
        %694 = vmatprep.subr.mxu0 %v402
        %695 = vmatpush1.msra.mxu0 %v401
        %696 = vmatprep.subr.mxu0 %v410
        %697 = vmatpush1.msra.mxu0 %v409
        %698 = vmatprep.subr.mxu0 0.0
        %699 = vmatpush1.msra.mxu0 0.0
        %700 = vmatprep.subr.mxu0 0.0
        %701 = vmatpush1.msra.mxu0 0.0
        %702 = vmatprep.subr.mxu0 0.0
        %703 = vmatpush1.msra.mxu0 0.0
        %704 = vmatprep.subr.mxu0 0.0
        %705 = vmatpush1.msra.mxu0 0.0
        %706 = vmatprep.subr.mxu0 0.0
        %707 = vmatpush1.msra.mxu0 0.0
        %708 = vmatprep.subr.mxu0 0.0
        %709 = vmatpush1.msra.mxu0 0.0
        %710 = vmatprep.subr.mxu0 0.0
        %711 = vmatpush1.msra.mxu0 0.0
        %712 = vmatprep.subr.mxu0 0.0
        %713 = vmatpush1.msra.mxu0 0.0
        %714 = vmatprep.subr.mxu0 0.0
        %715 = vmatpush1.msra.mxu0 0.0
        %716 = vmatprep.subr.mxu0 0.0
        %717 = vmatpush1.msra.mxu0 0.0
        %718 = vmatprep.subr.mxu0 0.0
        %719 = vmatpush1.msra.mxu0 0.0
        %720 = vmatprep.subr.mxu0 0.0
        %721 = vmatpush1.msra.mxu0 0.0
        %722 = vmatprep.subr.mxu0 0.0
        %723 = vmatpush1.msra.mxu0 0.0
        %724 = vmatprep.subr.mxu0 0.0
        %725 = vmatpush1.msra.mxu0 0.0
        %726 = vmatprep.subr.mxu0 0.0
        %727 = vmatpush1.msra.mxu0 0.0
        %728 = vmatprep.subr.mxu0 0.0
        %729 = vmatpush1.msra.mxu0 0.0
        %730 = vmatprep.mubr.f32.mxu0 0.0
        %731 = vmatmul.mubr.f32.gmra.mrb[0].mxu0 %v282
        %v732 = vpop.f32.mrb[0].mxu0
        %v733 = vadd.f32 %v440, %v732
        %v734 = vpop.f32.mrb[0].mxu0
        %v735 = vadd.f32 %v444, %v734
        %736 = vdwg.mxu0
        %v737 = vxor.u32 %v520, 2147483648
        %v738 = vxor.u32 %v522, 2147483648
        %v739 = vxor.u32 %v591, 2147483648
        %v740 = vxor.u32 %v593, 2147483648
        %v741 = vmul.f32 %v737, 1.442695
        %v742 = vpow.pop %v741
        %v743 = vmul.f32 %v738, 1.442695
        %v744 = vpow.pop %v743
        %v745 = vmul.f32 %v739, 1.442695
        %v746 = vpow.pop %v745
        %v747 = vmul.f32 %v740, 1.442695
        %v748 = vpow.pop %v747
        %v749 = vadd.f32 %v742, 1.0
        %v750 = vadd.f32 %v744, 1.0
        %v751 = vadd.f32 %v746, 1.0
        %v752 = vadd.f32 %v748, 1.0
        %v753 = vrcp.pop %v749
        %v754 = vmul.f32 1.0, %v753
        %v755 = vrcp.pop %v750
        %v756 = vmul.f32 1.0, %v755
        %v757 = vrcp.pop %v751
        %v758 = vmul.f32 1.0, %v757
        %v759 = vrcp.pop %v752
        %v760 = vmul.f32 1.0, %v759
        %v761 = vmul.f32 %v520, %v754
        %v762 = vmul.f32 %v522, %v756
        %v763 = vmul.f32 %v591, %v758
        %v764 = vmul.f32 %v593, %v760
        %v765 = vmul.f32 %v761, %v662
        %v766 = vmul.f32 %v762, %v664
        %v767 = vmul.f32 %v763, %v733
        %v768 = vmul.f32 %v764, %v735
        %v769 = vld [vmem:[#allocation8] sm:$0xff]
        %v770 = vld [vmem:[#allocation8 + $0x8] sm:$0xff]
        %v771 = vld [vmem:[#allocation8 + $0x10] sm:$0xff]
        %v772 = vld [vmem:[#allocation8 + $0x18] sm:$0xff]
        %v773 = vld [vmem:[#allocation8 + $0x20] sm:$0xff]
        %v774 = vld [vmem:[#allocation8 + $0x28] sm:$0xff]
        %v775 = vld [vmem:[#allocation8 + $0x30] sm:$0xff]
        %v776 = vld [vmem:[#allocation8 + $0x38] sm:$0xff]
        %v777 = vld [vmem:[#allocation8 + $0x40] sm:$0xff]
        %v778 = vld [vmem:[#allocation8 + $0x48] sm:$0xff]
        %v779 = vld [vmem:[#allocation8 + $0x50] sm:$0xff]
        %v780 = vld [vmem:[#allocation8 + $0x58] sm:$0xff]
        %v781 = vld [vmem:[#allocation8 + $0x60] sm:$0xff]
        %v782 = vld [vmem:[#allocation8 + $0x68] sm:$0xff]
        %v783 = vld [vmem:[#allocation8 + $0x70] sm:$0xff]
        %v784 = vld [vmem:[#allocation8 + $0x78] sm:$0xff]
        %v785 = vld [vmem:[#allocation8 + $0x80] sm:$0xff]
        %v786 = vld [vmem:[#allocation8 + $0x88] sm:$0xff]
        %v787 = vld [vmem:[#allocation8 + $0x90] sm:$0xff]
        %v788 = vld [vmem:[#allocation8 + $0x98] sm:$0xff]
        %v789 = vld [vmem:[#allocation8 + $0xa0] sm:$0xff]
        %v790 = vld [vmem:[#allocation8 + $0xa8] sm:$0xff]
        %v791 = vld [vmem:[#allocation8 + $0xb0] sm:$0xff]
        %v792 = vld [vmem:[#allocation8 + $0xb8] sm:$0xff]
        %v793 = vld [vmem:[#allocation8 + $0xc0] sm:$0xff]
        %v794 = vld [vmem:[#allocation8 + $0xc8] sm:$0xff]
        %v795 = vld [vmem:[#allocation8 + $0xd0] sm:$0xff]
        %v796 = vld [vmem:[#allocation8 + $0xd8] sm:$0xff]
        %v797 = vld [vmem:[#allocation8 + $0xe0] sm:$0xff]
        %v798 = vld [vmem:[#allocation8 + $0xe8] sm:$0xff]
        %v799 = vld [vmem:[#allocation8 + $0xf0] sm:$0xff]
        %v800 = vld [vmem:[#allocation8 + $0xf8] sm:$0xff]
        %v801 = vld [vmem:[#allocation8 + $0x100] sm:$0xff]
        %v802 = vld [vmem:[#allocation8 + $0x108] sm:$0xff]
        %v803 = vld [vmem:[#allocation8 + $0x110] sm:$0xff]
        %v804 = vld [vmem:[#allocation8 + $0x118] sm:$0xff]
        %v805 = vld [vmem:[#allocation8 + $0x120] sm:$0xff]
        %v806 = vld [vmem:[#allocation8 + $0x128] sm:$0xff]
        %v807 = vld [vmem:[#allocation8 + $0x130] sm:$0xff]
        %v808 = vld [vmem:[#allocation8 + $0x138] sm:$0xff]
        %v809 = vld [vmem:[#allocation8 + $0x140] sm:$0xff]
        %v810 = vld [vmem:[#allocation8 + $0x148] sm:$0xff]
        %v811 = vld [vmem:[#allocation8 + $0x150] sm:$0xff]
        %v812 = vld [vmem:[#allocation8 + $0x158] sm:$0xff]
        %v813 = vld [vmem:[#allocation8 + $0x160] sm:$0xff]
        %v814 = vld [vmem:[#allocation8 + $0x168] sm:$0xff]
        %v815 = vld [vmem:[#allocation8 + $0x170] sm:$0xff]
        %v816 = vld [vmem:[#allocation8 + $0x178] sm:$0xff]
        %v817 = vld [vmem:[#allocation8 + $0x180] sm:$0xff]
        %v818 = vld [vmem:[#allocation8 + $0x188] sm:$0xff]
        %v819 = vld [vmem:[#allocation8 + $0x190] sm:$0xff]
        %v820 = vld [vmem:[#allocation8 + $0x198] sm:$0xff]
        %v821 = vld [vmem:[#allocation8 + $0x1a0] sm:$0xff]
        %v822 = vld [vmem:[#allocation8 + $0x1a8] sm:$0xff]
        %v823 = vld [vmem:[#allocation8 + $0x1b0] sm:$0xff]
        %v824 = vld [vmem:[#allocation8 + $0x1b8] sm:$0xff]
        %v825 = vld [vmem:[#allocation8 + $0x1c0] sm:$0xff]
        %v826 = vld [vmem:[#allocation8 + $0x1c8] sm:$0xff]
        %v827 = vld [vmem:[#allocation8 + $0x1d0] sm:$0xff]
        %v828 = vld [vmem:[#allocation8 + $0x1d8] sm:$0xff]
        %v829 = vld [vmem:[#allocation8 + $0x1e0] sm:$0xff]
        %v830 = vld [vmem:[#allocation8 + $0x1e8] sm:$0xff]
        %v831 = vld [vmem:[#allocation8 + $0x1f0] sm:$0xff]
        %v832 = vld [vmem:[#allocation8 + $0x1f8] sm:$0xff]
        %v833 = vld [vmem:[%s4] sm:$0x1]
        %v835 = vlaneseq
        %v836 = vshrl.u32 %v835, 7
        %v837 = vsub.s32 0, %v836
        %v838 = vrot.slane %v833, %v837
        %840 = vmatprep.subr.mxu0 0.0
        %841 = vmatpush1.msra.mxu0 %v769
        %842 = vmatprep.subr.mxu0 0.0
        %843 = vmatpush1.msra.mxu0 %v770
        %844 = vmatprep.subr.mxu0 0.0
        %845 = vmatpush1.msra.mxu0 %v771
        %846 = vmatprep.subr.mxu0 0.0
        %847 = vmatpush1.msra.mxu0 %v772
        %848 = vmatprep.subr.mxu0 0.0
        %849 = vmatpush1.msra.mxu0 %v773
        %850 = vmatprep.subr.mxu0 0.0
        %851 = vmatpush1.msra.mxu0 %v774
        %852 = vmatprep.subr.mxu0 0.0
        %853 = vmatpush1.msra.mxu0 %v775
        %854 = vmatprep.subr.mxu0 0.0
        %855 = vmatpush1.msra.mxu0 %v776
        %856 = vmatprep.subr.mxu0 0.0
        %857 = vmatpush1.msra.mxu0 %v777
        %858 = vmatprep.subr.mxu0 0.0
        %859 = vmatpush1.msra.mxu0 %v778
        %860 = vmatprep.subr.mxu0 0.0
        %861 = vmatpush1.msra.mxu0 %v779
        %862 = vmatprep.subr.mxu0 0.0
        %863 = vmatpush1.msra.mxu0 %v780
        %864 = vmatprep.subr.mxu0 0.0
        %865 = vmatpush1.msra.mxu0 %v781
        %866 = vmatprep.subr.mxu0 0.0
        %867 = vmatpush1.msra.mxu0 %v782
        %868 = vmatprep.subr.mxu0 0.0
        %869 = vmatpush1.msra.mxu0 %v783
        %870 = vmatprep.subr.mxu0 0.0
        %871 = vmatpush1.msra.mxu0 %v784
        %872 = vmatprep.subr.mxu0 0.0
        %873 = vmatpush1.msra.mxu0 %v785
        %874 = vmatprep.subr.mxu0 0.0
        %875 = vmatpush1.msra.mxu0 %v786
        %876 = vmatprep.subr.mxu0 0.0
        %877 = vmatpush1.msra.mxu0 %v787
        %878 = vmatprep.subr.mxu0 0.0
        %879 = vmatpush1.msra.mxu0 %v788
        %880 = vmatprep.subr.mxu0 0.0
        %881 = vmatpush1.msra.mxu0 %v789
        %882 = vmatprep.subr.mxu0 0.0
        %883 = vmatpush1.msra.mxu0 %v790
        %884 = vmatprep.subr.mxu0 0.0
        %885 = vmatpush1.msra.mxu0 %v791
        %886 = vmatprep.subr.mxu0 0.0
        %887 = vmatpush1.msra.mxu0 %v792
        %888 = vmatprep.subr.mxu0 0.0
        %889 = vmatpush1.msra.mxu0 %v793
        %890 = vmatprep.subr.mxu0 0.0
        %891 = vmatpush1.msra.mxu0 %v794
        %892 = vmatprep.subr.mxu0 0.0
        %893 = vmatpush1.msra.mxu0 %v795
        %894 = vmatprep.subr.mxu0 0.0
        %895 = vmatpush1.msra.mxu0 %v796
        %896 = vmatprep.subr.mxu0 0.0
        %897 = vmatpush1.msra.mxu0 %v797
        %898 = vmatprep.subr.mxu0 0.0
        %899 = vmatpush1.msra.mxu0 %v798
        %900 = vmatprep.subr.mxu0 0.0
        %901 = vmatpush1.msra.mxu0 %v799
        %902 = vmatprep.subr.mxu0 0.0
        %903 = vmatpush1.msra.mxu0 %v800
        %904 = vmatprep.mubr.f32.mxu0 %v766
        %905 = vmatmul.mubr.f32.gmra.mrb[0].mxu0 %v765
        %v906 = vpop.f32.mrb[0].mxu0
        %v907 = vadd.f32 %v838, %v906
        %v908 = vpop.f32.mrb[0].mxu0
        %909 = vdwg.mxu0
        %910 = vmatprep.subr.mxu0 0.0
        %911 = vmatpush1.msra.mxu0 %v801
        %912 = vmatprep.subr.mxu0 0.0
        %913 = vmatpush1.msra.mxu0 %v802
        %914 = vmatprep.subr.mxu0 0.0
        %915 = vmatpush1.msra.mxu0 %v803
        %916 = vmatprep.subr.mxu0 0.0
        %917 = vmatpush1.msra.mxu0 %v804
        %918 = vmatprep.subr.mxu0 0.0
        %919 = vmatpush1.msra.mxu0 %v805
        %920 = vmatprep.subr.mxu0 0.0
        %921 = vmatpush1.msra.mxu0 %v806
        %922 = vmatprep.subr.mxu0 0.0
        %923 = vmatpush1.msra.mxu0 %v807
        %924 = vmatprep.subr.mxu0 0.0
        %925 = vmatpush1.msra.mxu0 %v808
        %926 = vmatprep.subr.mxu0 0.0
        %927 = vmatpush1.msra.mxu0 %v809
        %928 = vmatprep.subr.mxu0 0.0
        %929 = vmatpush1.msra.mxu0 %v810
        %930 = vmatprep.subr.mxu0 0.0
        %931 = vmatpush1.msra.mxu0 %v811
        %932 = vmatprep.subr.mxu0 0.0
        %933 = vmatpush1.msra.mxu0 %v812
        %934 = vmatprep.subr.mxu0 0.0
        %935 = vmatpush1.msra.mxu0 %v813
        %936 = vmatprep.subr.mxu0 0.0
        %937 = vmatpush1.msra.mxu0 %v814
        %938 = vmatprep.subr.mxu0 0.0
        %939 = vmatpush1.msra.mxu0 %v815
        %940 = vmatprep.subr.mxu0 0.0
        %941 = vmatpush1.msra.mxu0 %v816
        %942 = vmatprep.subr.mxu0 0.0
        %943 = vmatpush1.msra.mxu0 %v817
        %944 = vmatprep.subr.mxu0 0.0
        %945 = vmatpush1.msra.mxu0 %v818
        %946 = vmatprep.subr.mxu0 0.0
        %947 = vmatpush1.msra.mxu0 %v819
        %948 = vmatprep.subr.mxu0 0.0
        %949 = vmatpush1.msra.mxu0 %v820
        %950 = vmatprep.subr.mxu0 0.0
        %951 = vmatpush1.msra.mxu0 %v821
        %952 = vmatprep.subr.mxu0 0.0
        %953 = vmatpush1.msra.mxu0 %v822
        %954 = vmatprep.subr.mxu0 0.0
        %955 = vmatpush1.msra.mxu0 %v823
        %956 = vmatprep.subr.mxu0 0.0
        %957 = vmatpush1.msra.mxu0 %v824
        %958 = vmatprep.subr.mxu0 0.0
        %959 = vmatpush1.msra.mxu0 %v825
        %960 = vmatprep.subr.mxu0 0.0
        %961 = vmatpush1.msra.mxu0 %v826
        %962 = vmatprep.subr.mxu0 0.0
        %963 = vmatpush1.msra.mxu0 %v827
        %964 = vmatprep.subr.mxu0 0.0
        %965 = vmatpush1.msra.mxu0 %v828
        %966 = vmatprep.subr.mxu0 0.0
        %967 = vmatpush1.msra.mxu0 %v829
        %968 = vmatprep.subr.mxu0 0.0
        %969 = vmatpush1.msra.mxu0 %v830
        %970 = vmatprep.subr.mxu0 0.0
        %971 = vmatpush1.msra.mxu0 %v831
        %972 = vmatprep.subr.mxu0 0.0
        %973 = vmatpush1.msra.mxu0 %v832
        %974 = vmatprep.mubr.f32.mxu0 %v768
        %975 = vmatmul.mubr.f32.gmra.mrb[0].mxu0 %v767
        %v976 = vpop.f32.mrb[0].mxu0
        %v977 = vadd.f32 %v907, %v976
        %v978 = vpop.f32.mrb[0].mxu0
        %979 = vdwg.mxu0
        %980 = vst [vmem:[%s281] sm:$0xff] %v977
        %s981 = sand.u32 %s142, 1
        %s982 = scalar_lea.sflag [#allocation4], %s981
        %s983 = sand.u32 %s142, 1
        %s984 = smul.addr %s983, 8
        %s985 = scalar_lea.vmem [#allocation10], %s984
        // Predicated region
        $region57: #{tpu_custom_call.1} parent=39 // pred_check
          %p986 = pneg %p152
        $region58: #{tpu_custom_call.1} parent=39 // pred_check_branch
          %988 = sbr.rel (%p986) target = $region60
        $region59: #{tpu_custom_call.1} parent=39 // pred_region
          %s990 = ssub.s32 128, 128
          %991 = vsyncadd %s982, %s990
          %s992 = smul.addr %s24, 128
          %s993 = scalar_lea.hbm %s5, %s992
          %s995 = sshll.u32 %s985, 4
          %s996 = int_to_ptr.vmem [resolvable:$true] %s995
          %998 = dma.vmem_to_hbm [thread:$0]  %s996, 128, %s993, %s982
        $region60: #{tpu_custom_call.1} parent=39 // pred_fallthru
          _
      $region40: #{tpu_custom_call.1} parent=5 // pred_fallthru
        _
      %p999 = scmp.le.s32.totalorder 2, %s19
      // Predicated region
      $region61: #{tpu_custom_call.1} parent=5 // pred_check
        %p1000 = pneg %p999
      $region62: #{tpu_custom_call.1} parent=5 // pred_check_branch
        %1002 = sbr.rel (%p1000) target = $region64
      $region63: #{tpu_custom_call.1} parent=5 // pred_region
        %s1003 = ssub.s32 %s19, 2
        // Predicated region
        $region65: #{tpu_custom_call.1} parent=63 // pred_check
          %p1004 = pneg %p158
        $region66: #{tpu_custom_call.1} parent=63 // pred_check_branch
          %1006 = sbr.rel (%p1004) target = $region68
        $region67: #{tpu_custom_call.1} parent=63 // pred_region
          %s1007 = sand.u32 %s143, 1
          %s1008 = scalar_lea.sflag [#allocation4], %s1007
          %s1009 = sand.u32 %s143, 1
          %s1010 = smul.addr %s1009, 8
          %s1011 = scalar_lea.vmem [#allocation10], %s1010
          %1012 = dma.done %s1008, 128
        $region68: #{tpu_custom_call.1} parent=63 // pred_fallthru
          _
      $region64: #{tpu_custom_call.1} parent=5 // pred_fallthru
        _
    $region6: #{tpu_custom_call.1} parent=1 // loop_footer
      %s23 = sadd.s32 1, %s19
    $region7: #{tpu_custom_call.1} parent=1 // loop_footer_branch
      %18 = sbr.rel target = $region3
    $region8: #{tpu_custom_call.1} parent=1 // loop_exit
      _
    %1013 = vsyncpa [#allocation3], 1
    %s1014 = scalar_lea.sflag [#allocation3], 1
    %1015 = vsyncpa %s1014, 1
    %1016 = vsyncpa [#allocation6], 1
    %1017 = vsyncpa [#allocation9], 1
    %1018 = vsyncpa [#allocation4], 1
    %s1019 = scalar_lea.sflag [#allocation4], 1
    %1020 = vsyncpa %s1019, 1

</llo_original>
